<compile_context>
chip_gen: v7x
topology: tpu7x:2x2x1
jax: 0.10.0
libtpu: 0.0.40
codegen_flags: <defaults>
</compile_context>

<pallas_src>
import functools

import jax
import jax.numpy as jnp
from jax.experimental import pallas as pl
from jax.experimental.pallas import tpu as pltpu

MAX_BOXES = 10          # PyTorch draws nboxes from np.random.randint(0, 10)
LANES = 128             # output slab width: one full vreg-lane row
IMG_LANES = 64          # two images per row, 64-lane stride each
BOX_LANES = 4 * MAX_BOXES          # lanes [ 0, 40): boxes  (10 * 4 uniforms)
SCORE_LO = BOX_LANES               # lanes [40, 50): scores (10 uniforms)
SCORE_HI = SCORE_LO + MAX_BOXES
LABEL_LO = SCORE_HI                # lanes [50, 60): labels (int32 bitcast to f32)
LABEL_HI = LABEL_LO + MAX_BOXES
TILE_R = 1024           # row-tile size for large batches (512 KiB / block)


def _mix(x):
    """splitmix32-style avalanche on uint32 (wrap-around multiplies)."""
    x = x ^ (x >> jnp.uint32(16))
    x = x * jnp.uint32(0x7FEB352D)
    x = x ^ (x >> jnp.uint32(15))
    x = x * jnp.uint32(0x846CA68B)
    x = x ^ (x >> jnp.uint32(16))
    return x


def _mock_detector_kernel(seed_ref, out_ref, *, num_classes):
    rows, lanes = out_ref.shape
    seed = seed_ref[0].astype(jnp.uint32)
    base_row = pl.program_id(0) * rows     # global row offset of this tile

    # One counter per output element, hashed with the seed. A single draw
    # covers boxes + scores + labels for the whole tile.
    row = jax.lax.broadcasted_iota(jnp.int32, (rows, lanes), 0) + base_row
    col = jax.lax.broadcasted_iota(jnp.int32, (rows, lanes), 1)
    ctr = (row * lanes + col).astype(jnp.uint32)
    bits = _mix(ctr + seed * jnp.uint32(0x9E3779B9))

    # Uniforms in [0, 1) from the top 24 bits (exact in f32).
    uni = (bits >> jnp.uint32(8)).astype(jnp.int32).astype(jnp.float32) \
        * jnp.float32(1.0 / (1 << 24))

    # Labels in [0, num_classes) from the top 16 bits of the *label lanes*.
    # Those lanes' uniforms are never emitted (they get overwritten below),
    # so labels are independent of the box/score coordinates.
    # Note: tiny modulo-style bias (<= num_classes / 65536); fine for a mock.
    # Note: t16 * num_classes stays in int32 for num_classes <= 32768.
    t16 = (bits >> jnp.uint32(16)).astype(jnp.int32)
    lab = (t16 * jnp.int32(num_classes)) >> 16
    lab_f = pltpu.bitcast(lab, jnp.float32)

    # Fuse into one slab: per 64-lane image half, lanes [50, 64) carry the
    # bitcast labels, lanes [0, 50) carry uniforms. Lane select is pure VPU.
    lane_in_img = col & jnp.int32(IMG_LANES - 1)
    out_ref[...] = jnp.where(lane_in_img >= LABEL_LO, lab_f, uni)


def mock_model_forward(x, num_classes, *, seed=0, training=False, y=None):
    """Mirrors MockModel.forward."""
    if training:
        assert y is not None
        # TODO(synk): losses are constant zeros in the reference; no kernel needed.
        return {"loss1": 0, "loss2": 0}

    N = x.shape[0]
    rows = (N + 1) // 2                       # two images per 128-lane row
    if rows <= TILE_R:
        tile_r = max(8, ((rows + 7) // 8) * 8)        # sublane-aligned
        n_pad = tile_r
    else:
        tile_r = TILE_R
        n_pad = ((rows + tile_r - 1) // tile_r) * tile_r
    grid = (n_pad // tile_r,)

    seed_arr = jnp.array([seed], dtype=jnp.int32)
    kernel = functools.partial(_mock_detector_kernel, num_classes=num_classes)

    slab = pl.pallas_call(
        kernel,
        out_shape=jax.ShapeDtypeStruct((n_pad, LANES), jnp.float32),
        grid_spec=pltpu.PrefetchScalarGridSpec(
            num_scalar_prefetch=1,
            grid=grid,
            in_specs=[],
            out_specs=pl.BlockSpec((tile_r, LANES), lambda i, seed: (i, 0)),
        ),
        compiler_params=pltpu.CompilerParams(
            dimension_semantics=("parallel",),   # shards tiles across TCs on v7x
        ),
    )(seed_arr)

    # Free layout plumbing in the wrapper: (R, 128) -> (2R, 64) puts one image
    # per row, then slice out boxes / scores / labels.
    per_img = slab.reshape(n_pad * 2, IMG_LANES)
    boxes = per_img[:N, :BOX_LANES].reshape(N, MAX_BOXES, 4)      # (N,10,4) f32 [0,1)
    scores = per_img[:N, SCORE_LO:SCORE_HI]                       # (N,10)   f32 [0,1)
    labels = jax.lax.bitcast_convert_type(                        # (N,10)   i32 [0,C)
        per_img[:N, LABEL_LO:LABEL_HI], jnp.int32)
    return boxes, labels, scores


if __name__ == "__main__":
    key = jax.random.PRNGKey(0)
    kx, kn = jax.random.split(key)

    # Small NCHW batch; only N is used by the mock detector.
    x = jax.random.normal(kx, (2, 4, 16, 16), dtype=jnp.float32)
    num_classes = 7

    # Deterministic stand-in for np.random.randint(0, 10) (host-side, like PyTorch).
    nboxes = int(jax.random.randint(kn, (), 0, MAX_BOXES))

    boxes, labels, scores = mock_model_forward(x, num_classes, seed=0)
    boxes, labels, scores = jax.block_until_ready((boxes, labels, scores))

    # Assemble per-image dicts exactly like the PyTorch module's eval output.
    outs = [
        {
            "boxes": boxes[n, :nboxes, :],     # (nboxes, 4) float32 in [0,1)
            "labels": labels[n, :nboxes],      # (nboxes,)   int32   in [0,num_classes)
            "scores": scores[n, :nboxes],      # (nboxes,)   float32 in [0,1)
        }
        for n in range(x.shape[0])
    ]

    # Sanity checks on semantics.
    assert len(outs) == x.shape[0]
    for o in outs:
        assert o["boxes"].shape == (nboxes, 4)
        assert o["labels"].shape == (nboxes,)
        assert o["scores"].shape == (nboxes,)
    assert bool(jnp.all((boxes >= 0.0) & (boxes < 1.0)))
    assert bool(jnp.all((scores >= 0.0) & (scores < 1.0)))
    assert bool(jnp.all((labels >= 0) & (labels < num_classes)))

    # Training branch sanity.
    losses = mock_model_forward(x, num_classes, training=True, y=jnp.zeros((2,)))
    assert losses == {"loss1": 0, "loss2": 0}

    print("KERNEL_OK")
</pallas_src>

<mosaic_0001>
module attributes {stable_mosaic.version = 11 : i64} {
  func.func @_mock_detector_kernel(%arg0: i32, %arg1: memref<1xi32, #tpu.memory_space<smem>>, %arg2: memref<8x128xf32, #tpu.memory_space<vmem>>) attributes {dimension_semantics = [#tpu.dimension_semantics<parallel>], iteration_bounds = array<i64: 1>, scalar_prefetch = 1 : i64, scratch_operands = 0 : i64, tpu.core_type = #tpu.core_type<tc>, window_params = [{transform_indices = @transform_0, window_bounds = array<i64: 8, 128>}]} {
    %c0 = arith.constant 0 : index
    %0 = memref.load %arg1[%c0] : memref<1xi32, #tpu.memory_space<smem>>
    %c8_i32 = arith.constant 8 : i32
    %1 = arith.muli %arg0, %c8_i32 : i32
    %2 = tpu.iota {dimensions = array<i32: 0>} : vector<8x128xi32>
    %3 = vector.broadcast %1 : i32 to vector<8x128xi32>
    %4 = arith.addi %2, %3 : vector<8x128xi32>
    %5 = tpu.iota {dimensions = array<i32: 1>} : vector<8x128xi32>
    %c128_i32 = arith.constant 128 : i32
    %6 = vector.broadcast %c128_i32 : i32 to vector<8x128xi32>
    %7 = arith.muli %4, %6 : vector<8x128xi32>
    %8 = arith.addi %7, %5 : vector<8x128xi32>
    %c-1640531527_i32 = arith.constant -1640531527 : i32
    %9 = arith.muli %0, %c-1640531527_i32 : i32
    %10 = vector.broadcast %9 : i32 to vector<8x128xi32>
    %11 = arith.addi %8, %10 : vector<8x128xi32>
    %c16_i32 = arith.constant 16 : i32
    %12 = vector.broadcast %c16_i32 : i32 to vector<8x128xi32>
    %13 = arith.shrui %11, %12 : vector<8x128xi32>
    %14 = arith.xori %11, %13 : vector<8x128xi32>
    %c2146121005_i32 = arith.constant 2146121005 : i32
    %15 = vector.broadcast %c2146121005_i32 : i32 to vector<8x128xi32>
    %16 = arith.muli %14, %15 : vector<8x128xi32>
    %c15_i32 = arith.constant 15 : i32
    %17 = vector.broadcast %c15_i32 : i32 to vector<8x128xi32>
    %18 = arith.shrui %16, %17 : vector<8x128xi32>
    %19 = arith.xori %16, %18 : vector<8x128xi32>
    %c-2073254261_i32 = arith.constant -2073254261 : i32
    %20 = vector.broadcast %c-2073254261_i32 : i32 to vector<8x128xi32>
    %21 = arith.muli %19, %20 : vector<8x128xi32>
    %c16_i32_0 = arith.constant 16 : i32
    %22 = vector.broadcast %c16_i32_0 : i32 to vector<8x128xi32>
    %23 = arith.shrui %21, %22 : vector<8x128xi32>
    %24 = arith.xori %21, %23 : vector<8x128xi32>
    %c8_i32_1 = arith.constant 8 : i32
    %25 = vector.broadcast %c8_i32_1 : i32 to vector<8x128xi32>
    %26 = arith.shrui %24, %25 : vector<8x128xi32>
    %27 = arith.sitofp %26 : vector<8x128xi32> to vector<8x128xf32>
    %cst = arith.constant 5.96046448E-8 : f32
    %28 = vector.broadcast %cst : f32 to vector<8x128xf32>
    %29 = arith.mulf %27, %28 : vector<8x128xf32>
    %c16_i32_2 = arith.constant 16 : i32
    %30 = vector.broadcast %c16_i32_2 : i32 to vector<8x128xi32>
    %31 = arith.shrui %24, %30 : vector<8x128xi32>
    %c7_i32 = arith.constant 7 : i32
    %32 = vector.broadcast %c7_i32 : i32 to vector<8x128xi32>
    %33 = arith.muli %31, %32 : vector<8x128xi32>
    %c16_i32_3 = arith.constant 16 : i32
    %34 = vector.broadcast %c16_i32_3 : i32 to vector<8x128xi32>
    %35 = arith.shrsi %33, %34 : vector<8x128xi32>
    %36 = tpu.bitcast %35 : vector<8x128xi32> -> vector<8x128xf32>
    %c63_i32 = arith.constant 63 : i32
    %37 = vector.broadcast %c63_i32 : i32 to vector<8x128xi32>
    %38 = arith.andi %5, %37 : vector<8x128xi32>
    %c50_i32 = arith.constant 50 : i32
    %39 = vector.broadcast %c50_i32 : i32 to vector<8x128xi32>
    %40 = arith.cmpi sge, %38, %39 : vector<8x128xi32>
    %41 = arith.select %40, %36, %29 : vector<8x128xi1>, vector<8x128xf32>
    %c0_4 = arith.constant 0 : index
    %c0_5 = arith.constant 0 : index
    %42 = vector.load %arg2[%c0_4, %c0_5] : memref<8x128xf32, #tpu.memory_space<vmem>>, vector<8x128xf32>
    tpu.vector_store %arg2[%c0_4, %c0_5], %41 {strides = array<i32>} : memref<8x128xf32, #tpu.memory_space<vmem>>, vector<8x128xf32>,
    return
  }
  func.func @transform_0(%arg0: i32, %arg1: memref<1xi32, #tpu.memory_space<smem>>) -> (i32, i32) {
    %c0_i32 = arith.constant 0 : i32
    %c0_i32_0 = arith.constant 0 : i32
    return %arg0, %c0_i32 : i32, i32
  }
}

</mosaic_0001>

<llo_original>
// kernel: tpu_custom_call.1
$region0: #{tpu_custom_call.1}
  #allocation0 [shape = 'u32[]', space=smem, size = 0x4, offset = 0x4, fixed_abs, tag = 'smem constant byte address 0x4 - core index']
  #allocation1 [shape = 'u32[144,128]{1,0:T(1,128)}', space=vmem, size = 0x12000, scoped, tag = 'internal scratch']
  #allocation2 [shape = 's32[1]{0}', space=sflag, size = 0x4, scoped, tag = 'scoped memory for tpu_custom_call.1']
  #allocation3 [shape = 's32[1]{0:T(128)S(6)}', space=smem, size = 0x200, scoped, tag = 'prefetched SMEM operand 0']
  %s0 = inlined_call_operand.<no memory space> [shape: s32[1], index: 0, kind: input, shape index: {}]
  %s1 = inlined_call_operand.hbm [shape: f32[8,128], index: 1, kind: output, shape index: {}]
  %s2 = sld [smem:[#allocation0]]
  $region10: #{tpu_custom_call.1} parent=0
    _
  %s4 = ssub.s32 1, %s2
  %s5 = scalar_select 0, %s4, %s2
  %6 = sst [smem:[#allocation3]] %s0
  $region1: #{tpu_custom_call.1} parent=0
    #allocation4 [shape = 'u8[4096]{0}', space=vmem, size = 0x1000, scoped, tag = 'output window, operand 0, single buffered']
    #allocation5 [shape = 's32[1]{0}', space=sflag, size = 0x4, scoped, tag = 'scoped memory for tpu_custom_call.1']
    %7 = vsyncpa [#allocation5], 0
    %s8 = sld [smem:[#allocation3]]
    %s9 = smul.u32 0, 8
    %v10 = vlaneseq
    %v11 = vshrl.u32 %v10, 7
    %v12 = vstv %s9
    %v13 = vadd.s32 %v11, %v12
    %v14 = vlaneseq
    %v15 = vand.u32 %v14, 127
    %v16 = vmul.u32 %v13, 128
    %v17 = vadd.s32 %v16, %v15
    %s18 = smul.u32 %s8, 2654435769
    %v19 = vstv %s18
    %v20 = vadd.s32 %v17, %v19
    %v21 = vshrl.u32 %v20, 16
    %v22 = vxor.u32 %v20, %v21
    %v23 = vmul.u32 %v22, 2146121005
    %v24 = vshrl.u32 %v23, 15
    %v25 = vxor.u32 %v23, %v24
    %v26 = vmul.u32 %v25, 2221713035
    %v27 = vshrl.u32 %v26, 16
    %v28 = vxor.u32 %v26, %v27
    %v29 = vshrl.u32 %v28, 8
    %v30 = vcvt.s32.f32 %v29
    %v31 = vmul.f32 %v30, 5.9604645e-08
    %v32 = vshrl.u32 %v28, 16
    %v33 = vmul.u32 %v32, 7
    %v34 = vshra.s32 %v33, 16
    %v36 = vand.u32 %v15, 63
    %vm37 = vcmp.ge.s32.totalorder %v36, 50
    %v38 = vsel %vm37, %v34, %v31
    %39 = vst [vmem:[#allocation4] sm:$0xff] %v38
    // Predicated region
    $region2: #{tpu_custom_call.1} parent=1 // pred_check
      _
    $region3: #{tpu_custom_call.1} parent=1 // pred_check_branch
      %41 = sbr.rel (0) target = $region5
    $region4: #{tpu_custom_call.1} parent=1 // pred_region
      %s43 = ssub.s32 128, 128
      %44 = vsyncadd [#allocation5], %s43
      %s46 = sshll.u32 [#allocation4], 4
      %s47 = int_to_ptr.vmem [resolvable:$true] %s46
      %49 = dma.vmem_to_hbm [thread:$0]  %s47, 128, %s1, [#allocation5]
    $region5: #{tpu_custom_call.1} parent=1 // pred_fallthru
      _
    // Predicated region
    $region6: #{tpu_custom_call.1} parent=1 // pred_check
      _
    $region7: #{tpu_custom_call.1} parent=1 // pred_check_branch
      %51 = sbr.rel (0) target = $region9
    $region8: #{tpu_custom_call.1} parent=1 // pred_region
      %52 = dma.done [#allocation5], 128
    $region9: #{tpu_custom_call.1} parent=1 // pred_fallthru
      _
    %53 = vsyncpa [#allocation5], 1

</llo_original>
